<compile_context>
chip_gen: v6e
topology: v6e:2x2x1
jax: 0.10.0
libtpu: 0.0.40
codegen_flags: <defaults>
</compile_context>

<pallas_src>
import jax
import jax.numpy as jnp
from jax.experimental import pallas as pl
from jax.experimental.pallas import tpu as pltpu

F_IN = 10        # nn.Linear(10, 10)
HIDDEN = 10
F_OUT = 10
ONES_ROW = 10    # row of xT / h that carries the constant 1.0 (bias pickup)
PADDED_F = 16    # feature axis padded to a sublane multiple (8) that fits 10+1
_LANE = 128      # TPU lane width; batch axis is padded to a multiple of this


def _mlp_kernel(xT_ref, p_ref, oT_ref):
    """Fused  yT = W2p @ relu(W1p @ xT)  on a feature-major tile.

    xT_ref: [16, tm]    rows 0..9 = features, row 10 = 1.0 (bias row), rest 0
    p_ref:  [2, 16, 16] p[l] = [W_l | b_l column] zero-padded;
                        p[0][10,10] = 1.0 propagates the ones row past layer 1
    oT_ref: [16, tm]    rows 0..9 = real outputs
    """
    xT = xT_ref[...]                 # f32, lane-dense (batch on lanes)
    w1 = p_ref[0]                    # [16, 16]
    w2 = p_ref[1]                    # [16, 16]

    # Layer 1 + ReLU (b1 folded in via the ones row; ones row propagates as 1).
    h = jnp.dot(w1, xT, preferred_element_type=jnp.float32)
    h = jnp.maximum(h, 0.0)

    # Layer 2 (no activation, matches the PyTorch forward; b2 via ones row).
    y = jnp.dot(w2, h, preferred_element_type=jnp.float32)
    oT_ref[...] = y.astype(oT_ref.dtype)


def pack_params(w1, b1, w2, b2):
    """Call ONCE at init.  w1, w2: [out, in] (PyTorch layout); b1, b2: [out].

    Returns one f32 [2, 16, 16] array: layer l holds W_l in [:out, :in],
    b_l in the column right after the inputs, and (layer 0 only) a 1.0 at
    [ONES_ROW, ONES_ROW] so the bias row survives layer 1 + ReLU.
    """
    f32 = jnp.float32
    p = jnp.zeros((2, PADDED_F, PADDED_F), f32)
    p = p.at[0, :HIDDEN, :F_IN].set(w1.astype(f32))
    p = p.at[0, :HIDDEN, ONES_ROW].set(b1.astype(f32))
    p = p.at[0, ONES_ROW, ONES_ROW].set(1.0)          # propagate ones row
    p = p.at[1, :F_OUT, :HIDDEN].set(w2.astype(f32))
    p = p.at[1, :F_OUT, ONES_ROW].set(b2.astype(f32))
    return p


def mein_netz_forward(x, packed_params, *, batch_tile=4096):
    """x: [B, 10] f32, packed_params: from pack_params().  Returns [B, 10]."""
    assert batch_tile % _LANE == 0, "batch_tile must be a multiple of 128 lanes"
    B = x.shape[0]
    f32 = jnp.float32

    use_grid = B > batch_tile
    if use_grid:
        b_pad = -(-B // batch_tile) * batch_tile      # grid has >= 2 steps
    else:
        b_pad = -(-B // _LANE) * _LANE                # lane-dense single tile

    # Feature-major, bias-augmented input: batch on the 128-lane axis.
    xT = jnp.zeros((PADDED_F, b_pad), f32)
    xT = xT.at[:F_IN, :B].set(x.astype(f32).T)
    xT = xT.at[ONES_ROW, :].set(1.0)                  # ones row -> folds biases

    if not use_grid:
        # Small batch: gridless, single invocation, all operands resident in VMEM.
        yT = pl.pallas_call(
            _mlp_kernel,
            out_shape=jax.ShapeDtypeStruct((PADDED_F, b_pad), f32),
            in_specs=[
                pl.BlockSpec(memory_space=pltpu.MemorySpace.VMEM),
                pl.BlockSpec(memory_space=pltpu.MemorySpace.VMEM),
            ],
            out_specs=pl.BlockSpec(memory_space=pltpu.MemorySpace.VMEM),
        )(xT, packed_params)
    else:
        # Large batch: tile the lane (batch) axis; tiny packed weights stay
        # VMEM-resident (constant index_map); "parallel" shards the >=2-step
        # grid across v7x's 2 TensorCores.  Per-step footprint (double-buffered
        # in + out + params) is ~1 MB at tm=4096 -> no vmem_limit needed on any gen.
        tm = batch_tile
        yT = pl.pallas_call(
            _mlp_kernel,
            out_shape=jax.ShapeDtypeStruct((PADDED_F, b_pad), f32),
            grid=(b_pad // tm,),
            in_specs=[
                pl.BlockSpec((PADDED_F, tm), lambda i: (0, i)),
                pl.BlockSpec((2, PADDED_F, PADDED_F), lambda i: (0, 0, 0)),
            ],
            out_specs=pl.BlockSpec((PADDED_F, tm), lambda i: (0, i)),
            compiler_params=pltpu.CompilerParams(
                dimension_semantics=("parallel",)),
        )(xT, packed_params)

    return yT[:F_OUT, :B].T


def _reference(x, w1, b1, w2, b2):
    h = jnp.maximum(x @ w1.T + b1, 0.0)
    return h @ w2.T + b2


if __name__ == "__main__":
    key = jax.random.PRNGKey(0)
    k_x, k_w1, k_b1, k_w2, k_b2 = jax.random.split(key, 5)

    B, F = 8, 10  # batch=8, feature dim=10 (matches nn.Linear(10, 10))
    x = jax.random.normal(k_x, (B, F), dtype=jnp.float32)

    # Deterministic init mimicking PyTorch uniform(-1/sqrt(fan_in), 1/sqrt(fan_in)).
    bound = 1.0 / jnp.sqrt(jnp.float32(F))
    w1 = jax.random.uniform(k_w1, (F, F), jnp.float32, -bound, bound)  # [out, in]
    b1 = jax.random.uniform(k_b1, (F,), jnp.float32, -bound, bound)
    w2 = jax.random.uniform(k_w2, (F, F), jnp.float32, -bound, bound)  # [out, in]
    b2 = jax.random.uniform(k_b2, (F,), jnp.float32, -bound, bound)

    # Pack weights + biases once (module init time), not per call.
    params = pack_params(w1, b1, w2, b2)

    fwd = jax.jit(mein_netz_forward, static_argnames=("batch_tile",))

    # Small-batch (gridless) path — the spec's nominal use case.
    out = jax.block_until_ready(fwd(x, params))
    ref = _reference(x, w1, b1, w2, b2)
    assert out.shape == (B, F)
    assert jnp.allclose(out, ref, atol=1e-5, rtol=1e-5), "small-batch mismatch"

    # Batch-tiled (parallel-grid) path sanity check (small tile to force a grid).
    xb = jax.random.normal(k_x, (640, F), dtype=jnp.float32)
    outb = jax.block_until_ready(fwd(xb, params, batch_tile=256))
    refb = _reference(xb, w1, b1, w2, b2)
    assert outb.shape == (640, F)
    assert jnp.allclose(outb, refb, atol=1e-4, rtol=1e-4), "tiled-batch mismatch"

    print("KERNEL_OK")
</pallas_src>

<mosaic_0001>
module attributes {stable_mosaic.version = 11 : i64} {
  func.func @_mlp_kernel(%arg0: memref<16x128xf32, #tpu.memory_space<vmem>>, %arg1: memref<2x16x16xf32, #tpu.memory_space<vmem>>, %arg2: memref<16x128xf32, #tpu.memory_space<vmem>>) attributes {dimension_semantics = [], scalar_prefetch = 0 : i64, scratch_operands = 0 : i64, tpu.core_type = #tpu.core_type<tc>} {
    %c0 = arith.constant 0 : index
    %c0_0 = arith.constant 0 : index
    %0 = vector.load %arg0[%c0, %c0_0] : memref<16x128xf32, #tpu.memory_space<vmem>>, vector<16x128xf32>
    %c0_1 = arith.constant 0 : index
    %c0_2 = arith.constant 0 : index
    %c0_3 = arith.constant 0 : index
    %1 = vector.load %arg1[%c0_1, %c0_2, %c0_3] : memref<2x16x16xf32, #tpu.memory_space<vmem>>, vector<1x16x16xf32>
    %2 = vector.shape_cast %1 : vector<1x16x16xf32> to vector<16x16xf32>
    %c1 = arith.constant 1 : index
    %c0_4 = arith.constant 0 : index
    %c0_5 = arith.constant 0 : index
    %3 = vector.load %arg1[%c1, %c0_4, %c0_5] : memref<2x16x16xf32, #tpu.memory_space<vmem>>, vector<1x16x16xf32>
    %4 = vector.shape_cast %3 : vector<1x16x16xf32> to vector<16x16xf32>
    %cst = arith.constant dense<0.000000e+00> : vector<16x128xf32>
    %5 = tpu.matmul %2, %0, %cst {dimension_numbers = #tpu.dot_dimension_numbers<[1], [0], [0], [1], [0, 0, 1, 1], [], []>} : vector<16x16xf32>, vector<16x128xf32>, vector<16x128xf32> -> vector<16x128xf32>
    %cst_6 = arith.constant 0.000000e+00 : f32
    %6 = vector.broadcast %cst_6 : f32 to vector<16x128xf32>
    %7 = arith.maximumf %5, %6 : vector<16x128xf32>
    %cst_7 = arith.constant dense<0.000000e+00> : vector<16x128xf32>
    %8 = tpu.matmul %4, %7, %cst_7 {dimension_numbers = #tpu.dot_dimension_numbers<[1], [0], [0], [1], [0, 0, 1, 1], [], []>} : vector<16x16xf32>, vector<16x128xf32>, vector<16x128xf32> -> vector<16x128xf32>
    %c0_8 = arith.constant 0 : index
    %c0_9 = arith.constant 0 : index
    %9 = vector.load %arg2[%c0_8, %c0_9] : memref<16x128xf32, #tpu.memory_space<vmem>>, vector<16x128xf32>
    tpu.vector_store %arg2[%c0_8, %c0_9], %8 {strides = array<i32>} : memref<16x128xf32, #tpu.memory_space<vmem>>, vector<16x128xf32>,
    return
  }
}

</mosaic_0001>

<llo_original>
// kernel: mein_netz_forward.1
$region0: #{mein_netz_forward.1}
  #allocation0 [shape = 'u32[]', space=smem, size = 0x4, offset = 0x4, fixed_abs, tag = 'smem constant byte address 0x4 - core index']
  #allocation1 [shape = 'u32[144,128]{1,0:T(1,128)}', space=vmem, size = 0x12000, scoped, tag = 'internal scratch']
  %s0 = inlined_call_operand.vmem [shape: f32[16,128], index: 0, kind: input, shape index: {}]
  %s1 = inlined_call_operand.vmem [shape: f32[2,16,16], index: 1, kind: input, shape index: {}]
  %s2 = inlined_call_operand.vmem [shape: f32[16,128], index: 2, kind: output, shape index: {}]
  %s3 = sld [smem:[#allocation0]]
  $region18: #{mein_netz_forward.1} parent=0
    _
  %s5 = ssub.s32 1, %s3
  %s6 = scalar_select 0, %s5, %s3
  // Predicated region
  $region2: #{mein_netz_forward.1} parent=0 // pred_check
    _
  $region3: #{mein_netz_forward.1} parent=0 // pred_check_branch
    %8 = sbr.rel (0) target = $region5
  $region4: #{mein_netz_forward.1} parent=0 // pred_region
    _
  $region5: #{mein_netz_forward.1} parent=0 // pred_fallthru
    _
  // Predicated region
  $region6: #{mein_netz_forward.1} parent=0 // pred_check
    _
  $region7: #{mein_netz_forward.1} parent=0 // pred_check_branch
    %10 = sbr.rel (0) target = $region9
  $region8: #{mein_netz_forward.1} parent=0 // pred_region
    _
  $region9: #{mein_netz_forward.1} parent=0 // pred_fallthru
    _
  %v11 = vld [vmem:[%s0] sm:$0xff]
  %v12 = vld [vmem:[%s0 + $0x8] sm:$0xff]
  %v13 = vld [vmem:[%s1] sm:$0xff]
  %v14 = vld [vmem:[%s1 + $0x8] sm:$0xff]
  %s15 = scalar_lea.vmem %s1, 16
  %v16 = vld [vmem:[%s15] sm:$0xff]
  %v17 = vld [vmem:[%s15 + $0x8] sm:$0xff]
  %vm18 = vcmask 130048
  %v20 = vsel %vm18, %v13, 0
  %v23 = vsel %vm18, %v14, 0
  %25 = vmatprep.subr.mxu0 0.0
  %26 = vmatpush1.msra.mxu0 0.0
  %27 = vmatprep.subr.mxu0 0.0
  %28 = vmatpush1.msra.mxu0 0.0
  %29 = vmatprep.subr.mxu0 0.0
  %30 = vmatpush1.msra.mxu0 0.0
  %31 = vmatprep.subr.mxu0 0.0
  %32 = vmatpush1.msra.mxu0 0.0
  %33 = vmatprep.subr.mxu0 0.0
  %34 = vmatpush1.msra.mxu0 0.0
  %35 = vmatprep.subr.mxu0 0.0
  %36 = vmatpush1.msra.mxu0 0.0
  %37 = vmatprep.subr.mxu0 0.0
  %38 = vmatpush1.msra.mxu0 0.0
  %39 = vmatprep.subr.mxu0 0.0
  %40 = vmatpush1.msra.mxu0 0.0
  %41 = vmatprep.subr.mxu0 0.0
  %42 = vmatpush1.msra.mxu0 0.0
  %43 = vmatprep.subr.mxu0 0.0
  %44 = vmatpush1.msra.mxu0 0.0
  %45 = vmatprep.subr.mxu0 0.0
  %46 = vmatpush1.msra.mxu0 0.0
  %47 = vmatprep.subr.mxu0 0.0
  %48 = vmatpush1.msra.mxu0 0.0
  %49 = vmatprep.subr.mxu0 0.0
  %50 = vmatpush1.msra.mxu0 0.0
  %51 = vmatprep.subr.mxu0 0.0
  %52 = vmatpush1.msra.mxu0 0.0
  %53 = vmatprep.subr.mxu0 0.0
  %54 = vmatpush1.msra.mxu0 %v12
  %55 = vmatprep.subr.mxu0 0.0
  %56 = vmatpush1.msra.mxu0 %v11
  %57 = vmatprep.subr.mxu0 0.0
  %58 = vmatpush2.msra.mxu0 0.0
  %59 = vmatprep.subr.mxu0 0.0
  %60 = vmatpush2.msra.mxu0 0.0
  %61 = vmatprep.subr.mxu0 0.0
  %62 = vmatpush2.msra.mxu0 0.0
  %63 = vmatprep.subr.mxu0 0.0
  %64 = vmatpush2.msra.mxu0 0.0
  %65 = vmatprep.subr.mxu0 0.0
  %66 = vmatpush2.msra.mxu0 0.0
  %67 = vmatprep.subr.mxu0 0.0
  %68 = vmatpush2.msra.mxu0 0.0
  %69 = vmatprep.subr.mxu0 0.0
  %70 = vmatpush2.msra.mxu0 0.0
  %71 = vmatprep.subr.mxu0 0.0
  %72 = vmatpush2.msra.mxu0 0.0
  %73 = vmatprep.subr.mxu0 0.0
  %74 = vmatpush2.msra.mxu0 0.0
  %75 = vmatprep.subr.mxu0 0.0
  %76 = vmatpush2.msra.mxu0 0.0
  %77 = vmatprep.subr.mxu0 0.0
  %78 = vmatpush2.msra.mxu0 0.0
  %79 = vmatprep.subr.mxu0 0.0
  %80 = vmatpush2.msra.mxu0 0.0
  %81 = vmatprep.subr.mxu0 0.0
  %82 = vmatpush2.msra.mxu0 0.0
  %83 = vmatprep.subr.mxu0 0.0
  %84 = vmatpush2.msra.mxu0 0.0
  %85 = vmatprep.subr.mxu0 0.0
  %86 = vmatpush2.msra.mxu0 0.0
  %87 = vmatprep.subr.mxu0 0.0
  %88 = vmatpush2.msra.mxu0 0.0
  %89 = vmatprep.mubr.f32.mxu0 0.0
  %90 = vmatmul.mubr.f32.gmra.mxu0 %v20
  %v91 = vpop.f32.mrf.mxu0
  %v92 = vadd.f32 0.0, %v91
  %v93 = vpop.f32.mrf.mxu0
  %94 = vmatprep.mubr.f32.mxu0 0.0
  %95 = vmatmul.mubr.f32.gmra.mxu0 %v23
  %v96 = vpop.f32.mrf.mxu0
  %v97 = vadd.f32 0.0, %v96
  %v98 = vpop.f32.mrf.mxu0
  %99 = vdwg.mxu0
  %v100 = vmax.f32 %v92, 0.0
  %v101 = vmax.f32 %v97, 0.0
  %v103 = vsel %vm18, %v16, 0
  %v106 = vsel %vm18, %v17, 0
  %108 = vmatprep.subr.mxu0 0.0
  %109 = vmatpush1.msra.mxu0 0.0
  %110 = vmatprep.subr.mxu0 0.0
  %111 = vmatpush1.msra.mxu0 0.0
  %112 = vmatprep.subr.mxu0 0.0
  %113 = vmatpush1.msra.mxu0 0.0
  %114 = vmatprep.subr.mxu0 0.0
  %115 = vmatpush1.msra.mxu0 0.0
  %116 = vmatprep.subr.mxu0 0.0
  %117 = vmatpush1.msra.mxu0 0.0
  %118 = vmatprep.subr.mxu0 0.0
  %119 = vmatpush1.msra.mxu0 0.0
  %120 = vmatprep.subr.mxu0 0.0
  %121 = vmatpush1.msra.mxu0 0.0
  %122 = vmatprep.subr.mxu0 0.0
  %123 = vmatpush1.msra.mxu0 0.0
  %124 = vmatprep.subr.mxu0 0.0
  %125 = vmatpush1.msra.mxu0 0.0
  %126 = vmatprep.subr.mxu0 0.0
  %127 = vmatpush1.msra.mxu0 0.0
  %128 = vmatprep.subr.mxu0 0.0
  %129 = vmatpush1.msra.mxu0 0.0
  %130 = vmatprep.subr.mxu0 0.0
  %131 = vmatpush1.msra.mxu0 0.0
  %132 = vmatprep.subr.mxu0 0.0
  %133 = vmatpush1.msra.mxu0 0.0
  %134 = vmatprep.subr.mxu0 0.0
  %135 = vmatpush1.msra.mxu0 0.0
  %136 = vmatprep.subr.mxu0 0.0
  %137 = vmatpush1.msra.mxu0 %v101
  %138 = vmatprep.subr.mxu0 0.0
  %139 = vmatpush1.msra.mxu0 %v100
  %140 = vmatprep.subr.mxu0 0.0
  %141 = vmatpush2.msra.mxu0 0.0
  %142 = vmatprep.subr.mxu0 0.0
  %143 = vmatpush2.msra.mxu0 0.0
  %144 = vmatprep.subr.mxu0 0.0
  %145 = vmatpush2.msra.mxu0 0.0
  %146 = vmatprep.subr.mxu0 0.0
  %147 = vmatpush2.msra.mxu0 0.0
  %148 = vmatprep.subr.mxu0 0.0
  %149 = vmatpush2.msra.mxu0 0.0
  %150 = vmatprep.subr.mxu0 0.0
  %151 = vmatpush2.msra.mxu0 0.0
  %152 = vmatprep.subr.mxu0 0.0
  %153 = vmatpush2.msra.mxu0 0.0
  %154 = vmatprep.subr.mxu0 0.0
  %155 = vmatpush2.msra.mxu0 0.0
  %156 = vmatprep.subr.mxu0 0.0
  %157 = vmatpush2.msra.mxu0 0.0
  %158 = vmatprep.subr.mxu0 0.0
  %159 = vmatpush2.msra.mxu0 0.0
  %160 = vmatprep.subr.mxu0 0.0
  %161 = vmatpush2.msra.mxu0 0.0
  %162 = vmatprep.subr.mxu0 0.0
  %163 = vmatpush2.msra.mxu0 0.0
  %164 = vmatprep.subr.mxu0 0.0
  %165 = vmatpush2.msra.mxu0 0.0
  %166 = vmatprep.subr.mxu0 0.0
  %167 = vmatpush2.msra.mxu0 0.0
  %168 = vmatprep.subr.mxu0 0.0
  %169 = vmatpush2.msra.mxu0 0.0
  %170 = vmatprep.subr.mxu0 0.0
  %171 = vmatpush2.msra.mxu0 0.0
  %172 = vmatprep.mubr.f32.mxu0 0.0
  %173 = vmatmul.mubr.f32.gmra.mxu0 %v103
  %v174 = vpop.f32.mrf.mxu0
  %v175 = vadd.f32 0.0, %v174
  %v176 = vpop.f32.mrf.mxu0
  %177 = vmatprep.mubr.f32.mxu0 0.0
  %178 = vmatmul.mubr.f32.gmra.mxu0 %v106
  %v179 = vpop.f32.mrf.mxu0
  %v180 = vadd.f32 0.0, %v179
  %v181 = vpop.f32.mrf.mxu0
  %182 = vdwg.mxu0
  %183 = vst [vmem:[%s2] sm:$0xff] %v175
  %184 = vst [vmem:[%s2 + $0x8] sm:$0xff] %v180
  // Predicated region
  $region10: #{mein_netz_forward.1} parent=0 // pred_check
    _
  $region11: #{mein_netz_forward.1} parent=0 // pred_check_branch
    %186 = sbr.rel (0) target = $region13
  $region12: #{mein_netz_forward.1} parent=0 // pred_region
    _
  $region13: #{mein_netz_forward.1} parent=0 // pred_fallthru
    _
  // Predicated region
  $region14: #{mein_netz_forward.1} parent=0 // pred_check
    _
  $region15: #{mein_netz_forward.1} parent=0 // pred_check_branch
    %188 = sbr.rel (0) target = $region17
  $region16: #{mein_netz_forward.1} parent=0 // pred_region
    _
  $region17: #{mein_netz_forward.1} parent=0 // pred_fallthru
    _

</llo_original>
